<compile_context>
chip_gen: v6e
topology: v6e:2x2x1
jax: 0.10.0
libtpu: 0.0.40
codegen_flags: <defaults>
</compile_context>

<pallas_src>
import functools

import jax
import jax.numpy as jnp
from jax.experimental import pallas as pl
from jax.experimental.pallas import tpu as pltpu


_CHUNK = 2048  # class-chunk width (lanes) for the online LSE; multiple of 128


def _round_up(x, m):
    return ((x + m - 1) // m) * m


def _softmax_nll_kernel(logits_ref, y_ref, out_ref, *,
                        inv_logits_T, inv_T, n_rows, block_rows,
                        chunk, num_full_chunks, tail_cols):
    i = pl.program_id(0)
    tm = block_rows

    y = y_ref[...]                                            # (tm, 1) int32

    m0 = jnp.full((tm, 1), -jnp.inf, dtype=jnp.float32)
    s0 = jnp.zeros((tm, 1), dtype=jnp.float32)
    t0 = jnp.zeros((tm, 1), dtype=jnp.float32)

    def update(carry, raw, col_off, width):
        m, s, t = carry
        x = raw.astype(jnp.float32) * inv_logits_T            # (tm, width) f32
        m_new = jnp.maximum(m, jnp.max(x, axis=-1, keepdims=True))
        s = s * jnp.exp(m - m_new) + jnp.sum(jnp.exp(x - m_new),
                                             axis=-1, keepdims=True)
        # One-hot target gather in the input's native dtype (half-vreg width
        # on bf16). Exact: at most one lane per row is non-zero.
        col = jax.lax.broadcasted_iota(jnp.int32, (tm, width), 1) + col_off
        sel = jnp.where(col == y, raw, 0)
        t = t + jnp.sum(sel, axis=-1, keepdims=True).astype(jnp.float32)
        return m_new, s, t

    carry = (m0, s0, t0)

    # Online LSE over full class chunks (bounds live temps independent of C).
    if num_full_chunks > 0:
        def body(j, carry):
            start = pl.multiple_of(j * chunk, chunk)
            raw = logits_ref[:, pl.ds(start, chunk)]
            return update(carry, raw, j * chunk, chunk)
        carry = jax.lax.fori_loop(0, num_full_chunks, body, carry)

    # Static tail chunk (C not a multiple of the chunk width).
    if tail_cols > 0:
        start = num_full_chunks * chunk                       # static
        raw = logits_ref[:, pl.ds(start, tail_cols)]
        carry = update(carry, raw, start, tail_cols)

    m, s, t = carry
    per_row = (m + jnp.log(s)) - t * inv_logits_T             # (tm, 1) f32

    # Mask rows past the true batch size (padded rows of the last tile).
    # NOTE: must stay a select -- padded-row garbage can be NaN/inf.
    row = jax.lax.broadcasted_iota(jnp.int32, (tm, 1), 0) + i * block_rows
    per_row = jnp.where(row < n_rows, per_row, 0.0)

    # One tempered partial per tile, broadcast to a lane-dense (1, 128) block
    # (unmasked store); the wrapper sums partials[:, 0].
    partial = jnp.sum(per_row) * inv_T
    out_ref[...] = jnp.broadcast_to(partial, (1, 128)).astype(jnp.float32)


def softmax_nll(logits, y, temperature=1.0, logits_temperature=1.0):
    """Pallas TPU implementation of SoftmaxNLL.forward."""
    n, c = logits.shape
    y2d = y.astype(jnp.int32).reshape(n, 1)

    itemsize = jnp.dtype(logits.dtype).itemsize
    sublane = max(8, 32 // itemsize)              # 8 f32 / 16 bf16
    chunk_cols = min(c, _CHUNK)
    num_full_chunks, tail_cols = divmod(c, _CHUNK)

    # Adaptive row tile: ~24 MiB budget for the double-buffered input tile
    # plus in-kernel temporaries (f32 x + exp temp + i32 iota ~= 12 B/elem
    # over one class chunk). Safe on v7x (64 MiB) and v5e/v6e (128 MiB).
    budget = 24 << 20
    per_row_bytes = 2 * c * itemsize + 12 * chunk_cols + 24
    tm_budget = max(sublane, (budget // per_row_bytes) // sublane * sublane)
    tm_budget = min(tm_budget, 2048)

    if tm_budget >= n:
        if n >= 2 * sublane:
            # Keep >= 2 grid steps so v7x megacore can use both TensorCores.
            tm = _round_up(pl.cdiv(n, 2), sublane)
        else:
            tm = n                                # single full-extent tile
    else:
        tm = tm_budget

    num_tiles = pl.cdiv(n, tm)

    # Scoped-VMEM limit: actual need + headroom, capped at 75% of physical
    # VMEM on this generation (leaves room for Mosaic internal scratch).
    try:
        vmem_cap = int(pltpu.get_tpu_info().vmem_capacity_bytes)
    except Exception:
        vmem_cap = 64 << 20                       # assume smallest (v7x)
    vmem_ceiling = (vmem_cap * 3) // 4
    vmem_needed = (2 * tm * c * itemsize          # double-buffered logits
                   + 12 * tm * chunk_cols         # f32 x + exp temp + i32 iota
                   + 2 * tm * 4                   # double-buffered labels
                   + 2 * 128 * 4                  # output block
                   + (2 << 20))                   # misc headroom
    vmem_limit = int(min(max(vmem_needed, 16 << 20), vmem_ceiling))

    kernel = functools.partial(
        _softmax_nll_kernel,
        inv_logits_T=float(1.0 / logits_temperature),
        inv_T=float(1.0 / temperature),
        n_rows=n,
        block_rows=tm,
        chunk=_CHUNK,
        num_full_chunks=num_full_chunks,
        tail_cols=tail_cols,
    )

    partials = pl.pallas_call(
        kernel,
        out_shape=jax.ShapeDtypeStruct((num_tiles, 128), jnp.float32),
        grid=(num_tiles,),
        in_specs=[
            pl.BlockSpec((tm, c), lambda i: (i, 0)),   # logits row tile
            pl.BlockSpec((tm, 1), lambda i: (i, 0)),   # labels row tile
        ],
        out_specs=pl.BlockSpec((1, 128), lambda i: (i, 0)),
        compiler_params=pltpu.CompilerParams(
            dimension_semantics=("parallel",),
            vmem_limit_bytes=vmem_limit,
        ),
    )(logits, y2d)

    return jnp.sum(partials[:, 0])


def _reference(logits, labels, T, logits_T):
    x = logits.astype(jnp.float32) / logits_T
    lse = jax.scipy.special.logsumexp(x, axis=-1)
    return jnp.sum(lse - x[jnp.arange(x.shape[0]), labels]) / T


if __name__ == "__main__":
    key = jax.random.PRNGKey(0)
    keys = jax.random.split(key, 8)
    T, logits_T = 2.0, 0.5

    # 1) Small case consistent with the module: batch=8, classes=32.
    N, C = 8, 32
    logits = jax.random.normal(keys[0], (N, C), dtype=jnp.float32)
    labels = jax.random.randint(keys[1], (N,), 0, C, dtype=jnp.int32)
    loss = jax.block_until_ready(softmax_nll(logits, labels, T, logits_T))
    ref = _reference(logits, labels, T, logits_T)
    assert jnp.allclose(loss, ref, rtol=1e-5, atol=1e-5), (loss, ref)

    # 2) Row tiling + padded-row masking (n not a multiple of the row tile).
    N2, C2 = 1000, 128
    logits2 = jax.random.normal(keys[2], (N2, C2), dtype=jnp.float32)
    labels2 = jax.random.randint(keys[3], (N2,), 0, C2, dtype=jnp.int32)
    loss2 = jax.block_until_ready(softmax_nll(logits2, labels2, T, logits_T))
    ref2 = _reference(logits2, labels2, T, logits_T)
    assert jnp.allclose(loss2, ref2, rtol=1e-4, atol=1e-4), (loss2, ref2)

    # 3) Class-chunked online-LSE path (2 full chunks + a 256-lane tail).
    N3, C3 = 32, 2 * _CHUNK + 256
    logits3 = jax.random.normal(keys[4], (N3, C3), dtype=jnp.float32)
    labels3 = jax.random.randint(keys[5], (N3,), 0, C3, dtype=jnp.int32)
    loss3 = jax.block_until_ready(softmax_nll(logits3, labels3, T, logits_T))
    ref3 = _reference(logits3, labels3, T, logits_T)
    assert jnp.allclose(loss3, ref3, rtol=1e-4, atol=1e-4), (loss3, ref3)

    # 4) bf16 logits (half DMA bytes; native-dtype target gather).
    N4, C4 = 64, 256
    logits4 = jax.random.normal(keys[6], (N4, C4),
                                dtype=jnp.float32).astype(jnp.bfloat16)
    labels4 = jax.random.randint(keys[7], (N4,), 0, C4, dtype=jnp.int32)
    loss4 = jax.block_until_ready(softmax_nll(logits4, labels4, T, logits_T))
    ref4 = _reference(logits4, labels4, T, logits_T)
    assert jnp.allclose(loss4, ref4, rtol=1e-3, atol=1e-3), (loss4, ref4)

    print("KERNEL_OK")
</pallas_src>

<mosaic_0001>
module attributes {stable_mosaic.version = 11 : i64} {
  func.func @_softmax_nll_kernel(%arg0: i32, %arg1: memref<8x32xf32, #tpu.memory_space<vmem>>, %arg2: memref<8x1xi32, #tpu.memory_space<vmem>>, %arg3: memref<1x128xf32, #tpu.memory_space<vmem>>) attributes {dimension_semantics = [#tpu.dimension_semantics<parallel>], iteration_bounds = array<i64: 1>, scalar_prefetch = 0 : i64, scratch_operands = 0 : i64, tpu.core_type = #tpu.core_type<tc>, window_params = [{transform_indices = @transform_0, window_bounds = array<i64: 8, 32>}, {transform_indices = @transform_1, window_bounds = array<i64: 8, 1>}, {transform_indices = @transform_2, window_bounds = array<i64: 1, 128>}]} {
    %c0 = arith.constant 0 : index
    %c0_0 = arith.constant 0 : index
    %0 = vector.load %arg2[%c0, %c0_0] : memref<8x1xi32, #tpu.memory_space<vmem>>, vector<8x1xi32>
    %cst = arith.constant 0xFF800000 : f32
    %1 = vector.broadcast %cst : f32 to vector<8x1xf32>
    %cst_1 = arith.constant 0.000000e+00 : f32
    %2 = vector.broadcast %cst_1 : f32 to vector<8x1xf32>
    %cst_2 = arith.constant 0.000000e+00 : f32
    %3 = vector.broadcast %cst_2 : f32 to vector<8x1xf32>
    %c0_3 = arith.constant 0 : index
    %c0_4 = arith.constant 0 : index
    %4 = vector.load %arg1[%c0_3, %c0_4] : memref<8x32xf32, #tpu.memory_space<vmem>>, vector<8x32xf32>
    %cst_5 = arith.constant 2.000000e+00 : f32
    %5 = vector.broadcast %cst_5 : f32 to vector<8x32xf32>
    %6 = arith.mulf %4, %5 : vector<8x32xf32>
    %cst_6 = arith.constant dense<0xFF800000> : vector<8xf32>
    %7 = vector.multi_reduction <maximumf>, %6, %cst_6 [1] : vector<8x32xf32> to vector<8xf32>
    %8 = vector.shape_cast %7 : vector<8xf32> to vector<8x1xf32>
    %9 = arith.maximumf %1, %8 : vector<8x1xf32>
    %10 = arith.subf %1, %9 : vector<8x1xf32>
    %11 = math.exp %10 : vector<8x1xf32>
    %12 = arith.mulf %2, %11 : vector<8x1xf32>
    %13 = vector.broadcast %9 : vector<8x1xf32> to vector<8x32xf32>
    %14 = arith.subf %6, %13 : vector<8x32xf32>
    %15 = math.exp %14 : vector<8x32xf32>
    %cst_7 = arith.constant dense<0.000000e+00> : vector<8xf32>
    %16 = vector.multi_reduction <add>, %15, %cst_7 [1] : vector<8x32xf32> to vector<8xf32>
    %17 = vector.shape_cast %16 : vector<8xf32> to vector<8x1xf32>
    %18 = arith.addf %12, %17 : vector<8x1xf32>
    %19 = tpu.iota {dimensions = array<i32: 1>} : vector<8x32xi32>
    %c0_i32 = arith.constant 0 : i32
    %20 = vector.broadcast %c0_i32 : i32 to vector<8x32xi32>
    %21 = arith.addi %19, %20 : vector<8x32xi32>
    %22 = vector.broadcast %0 : vector<8x1xi32> to vector<8x32xi32>
    %23 = arith.cmpi eq, %21, %22 : vector<8x32xi32>
    %c0_i32_8 = arith.constant 0 : i32
    %24 = arith.sitofp %c0_i32_8 : i32 to f32
    %25 = vector.broadcast %24 : f32 to vector<8x32xf32>
    %26 = arith.select %23, %4, %25 : vector<8x32xi1>, vector<8x32xf32>
    %cst_9 = arith.constant dense<0.000000e+00> : vector<8xf32>
    %27 = vector.multi_reduction <add>, %26, %cst_9 [1] : vector<8x32xf32> to vector<8xf32>
    %28 = vector.shape_cast %27 : vector<8xf32> to vector<8x1xf32>
    %29 = arith.addf %3, %28 : vector<8x1xf32>
    %30 = math.log %18 : vector<8x1xf32>
    %31 = arith.addf %9, %30 : vector<8x1xf32>
    %cst_10 = arith.constant 2.000000e+00 : f32
    %32 = vector.broadcast %cst_10 : f32 to vector<8x1xf32>
    %33 = arith.mulf %29, %32 : vector<8x1xf32>
    %34 = arith.subf %31, %33 : vector<8x1xf32>
    %35 = tpu.iota {dimensions = array<i32: 0>} : vector<8x1xi32>
    %c8_i32 = arith.constant 8 : i32
    %36 = arith.muli %arg0, %c8_i32 : i32
    %37 = vector.broadcast %36 : i32 to vector<8x1xi32>
    %38 = arith.addi %35, %37 : vector<8x1xi32>
    %c8_i32_11 = arith.constant 8 : i32
    %39 = vector.broadcast %c8_i32_11 : i32 to vector<8x1xi32>
    %40 = arith.cmpi slt, %38, %39 : vector<8x1xi32>
    %cst_12 = arith.constant 0.000000e+00 : f32
    %41 = vector.broadcast %cst_12 : f32 to vector<8x1xf32>
    %42 = arith.select %40, %34, %41 : vector<8x1xi1>, vector<8x1xf32>
    %43 = vector.shape_cast %42 : vector<8x1xf32> to vector<1x8x1xf32>
    %cst_13 = arith.constant dense<0.000000e+00> : vector<1xf32>
    %44 = vector.multi_reduction <add>, %43, %cst_13 [1, 2] : vector<1x8x1xf32> to vector<1xf32>
    %45 = vector.shape_cast %44 : vector<1xf32> to vector<1x1x1xf32>
    %46 = vector.extract %45[0, 0, 0] : f32 from vector<1x1x1xf32>
    %cst_14 = arith.constant 5.000000e-01 : f32
    %47 = arith.mulf %46, %cst_14 : f32
    %48 = vector.broadcast %47 : f32 to vector<1x128xf32>
    %c0_15 = arith.constant 0 : index
    %c0_16 = arith.constant 0 : index
    %49 = vector.load %arg3[%c0_15, %c0_16] : memref<1x128xf32, #tpu.memory_space<vmem>>, vector<1x128xf32>
    tpu.vector_store %arg3[%c0_15, %c0_16], %48 {strides = array<i32>} : memref<1x128xf32, #tpu.memory_space<vmem>>, vector<1x128xf32>,
    return
  }
  func.func @transform_0(%arg0: i32) -> (i32, i32) {
    %c0_i32 = arith.constant 0 : i32
    %c0_i32_0 = arith.constant 0 : i32
    return %arg0, %c0_i32 : i32, i32
  }
  func.func @transform_1(%arg0: i32) -> (i32, i32) {
    %c0_i32 = arith.constant 0 : i32
    %c0_i32_0 = arith.constant 0 : i32
    return %arg0, %c0_i32 : i32, i32
  }
  func.func @transform_2(%arg0: i32) -> (i32, i32) {
    %c0_i32 = arith.constant 0 : i32
    %c0_i32_0 = arith.constant 0 : i32
    return %arg0, %c0_i32 : i32, i32
  }
}

</mosaic_0001>

<llo_original>
// kernel: tpu_custom_call.1
$region0: #{tpu_custom_call.1}
  #allocation0 [shape = 'u32[]', space=smem, size = 0x4, offset = 0x4, fixed_abs, tag = 'smem constant byte address 0x4 - core index']
  #allocation1 [shape = 'u32[144,128]{1,0:T(1,128)}', space=vmem, size = 0x12000, scoped, tag = 'internal scratch']
  %s0 = inlined_call_operand.vmem [shape: f32[8,32], index: 0, kind: input, shape index: {}]
  %s1 = inlined_call_operand.vmem [shape: s32[8,1], index: 1, kind: input, shape index: {}]
  %s2 = inlined_call_operand.hbm [shape: f32[1,128], index: 2, kind: output, shape index: {}]
  %s3 = sld [smem:[#allocation0]]
  $region18: #{tpu_custom_call.1} parent=0
    _
  %s5 = ssub.s32 1, %s3
  %s6 = scalar_select 0, %s5, %s3
  $region1: #{tpu_custom_call.1} parent=0
    #allocation2 [shape = 'u8[512]{0}', space=vmem, size = 0x400, scoped, tag = 'output window, operand 0, single buffered']
    #allocation3 [shape = 's32[1]{0}', space=sflag, size = 0x4, scoped, tag = 'scoped memory for tpu_custom_call.1']
    %7 = vsyncpa [#allocation3], 0
    // Predicated region
    $region2: #{tpu_custom_call.1} parent=1 // pred_check
      _
    $region3: #{tpu_custom_call.1} parent=1 // pred_check_branch
      %9 = sbr.rel (0) target = $region5
    $region4: #{tpu_custom_call.1} parent=1 // pred_region
      _
    $region5: #{tpu_custom_call.1} parent=1 // pred_fallthru
      _
    // Predicated region
    $region6: #{tpu_custom_call.1} parent=1 // pred_check
      _
    $region7: #{tpu_custom_call.1} parent=1 // pred_check_branch
      %11 = sbr.rel (0) target = $region9
    $region8: #{tpu_custom_call.1} parent=1 // pred_region
      _
    $region9: #{tpu_custom_call.1} parent=1 // pred_fallthru
      _
    %v12 = vld [vmem:[%s1] sm:$0xff]
    %v13 = vld [vmem:[%s0] sm:$0xff]
    %v14 = vmul.f32 %v13, 2.0
    %vm15 = vcmask 261120
    %v16 = vsel %vm15, %v14, -inf
    %17 = vmax.xlane.f32.xlu0 %v16
    %v18 = vpop.xlane.xlu0 %17
    %v19 = vsub.f32 -inf, %v18
    %v20 = vmul.f32 %v19, 1.442695
    %v21 = vpow.pop %v20
    %v22 = vmul.f32 %v21, 0.0
    %v23 = vsub.f32 %v14, %v18
    %v24 = vmul.f32 %v23, 1.442695
    %v25 = vpow.pop %v24
    %v26 = vsel %vm15, %v25, 0.0
    %27 = vadd.xlane.f32.xlu0 %v26
    %v28 = vpop.xlane.xlu0 %27
    %v29 = vadd.f32 %v22, %v28
    %v30 = vlaneseq
    %v31 = vand.u32 %v30, 127
    %32 = vset.pattern.permute.xlu0 0
    %33 = vperm.xlu0 %32, %v12
    %v34 = vpop.permute.xlu0 %33
    %vm35 = vcmp.eq.s32.totalorder %v31, %v34
    %v36 = vsel %vm35, %v13, 0.0
    %v37 = vsel %vm15, %v36, 0.0
    %38 = vadd.xlane.f32.xlu0 %v37
    %v39 = vpop.xlane.xlu0 %38
    %v40 = vadd.f32 %v39, 0.0
    %v41 = vlog2.pop %v29
    %v42 = vmul.f32 %v41, 0.6931472
    %v43 = vadd.f32 %v18, %v42
    %v44 = vmul.f32 %v40, 2.0
    %v45 = vsub.f32 %v43, %v44
    %v46 = vlaneseq
    %v47 = vshrl.u32 %v46, 7
    %s48 = smul.u32 0, 8
    %v49 = vstv %s48
    %v50 = vadd.s32 %v47, %v49
    %vm51 = vcmp.lt.s32.totalorder %v50, 8
    %v52 = vsel %vm51, %v45, 0.0
    %vm53 = vcmask 7168
    %v54 = vsel %vm53, %v52, 0.0
    %55 = vadd.xlane.f32.xlu0 %v54
    %v56 = vpop.xlane.xlu0 %55
    %v57 = vrot.slane %v56, 4
    %v58 = vadd.f32 %v56, %v57
    %v59 = vrot.slane %v58, 2
    %v60 = vadd.f32 %v58, %v59
    %v61 = vrot.slane %v60, 1
    %v62 = vadd.f32 %v60, %v61
    %s63 = vtos %v62
    %s64 = smul.f32 %s63, 0.5
    %v65 = vstv %s64
    %66 = vst [vmem:[#allocation2] sm:$0x1] %v65
    // Predicated region
    $region10: #{tpu_custom_call.1} parent=1 // pred_check
      _
    $region11: #{tpu_custom_call.1} parent=1 // pred_check_branch
      %68 = sbr.rel (0) target = $region13
    $region12: #{tpu_custom_call.1} parent=1 // pred_region
      %s70 = ssub.s32 16, 16
      %71 = vsyncadd [#allocation3], %s70
      %s73 = sshll.u32 [#allocation2], 4
      %s74 = int_to_ptr.vmem [resolvable:$true] %s73
      %76 = dma.vmem_to_hbm [thread:$0]  %s74, 16, %s2, [#allocation3]
    $region13: #{tpu_custom_call.1} parent=1 // pred_fallthru
      _
    // Predicated region
    $region14: #{tpu_custom_call.1} parent=1 // pred_check
      _
    $region15: #{tpu_custom_call.1} parent=1 // pred_check_branch
      %78 = sbr.rel (0) target = $region17
    $region16: #{tpu_custom_call.1} parent=1 // pred_region
      %79 = dma.done [#allocation3], 16
    $region17: #{tpu_custom_call.1} parent=1 // pred_fallthru
      _
    %80 = vsyncpa [#allocation3], 1

</llo_original>
